<compile_context>
chip_gen: v7x
topology: tpu7x:2x2x1
jax: 0.10.0
libtpu: 0.0.40
codegen_flags: <defaults>
</compile_context>

<pallas_src>
import math
from typing import NamedTuple

import jax
import jax.numpy as jnp
from jax.experimental import pallas as pl
from jax.experimental.pallas import tpu as pltpu


# ----------------------------------------------------------------------------
# Geometry
# ----------------------------------------------------------------------------

def _round_up(x, m):
    return ((x + m - 1) // m) * m


class GRUGeom(NamedTuple):
    B: int
    I: int
    H: int
    Bp: int   # padded batch (sublane / tile multiple)
    Ip: int   # padded input size (128 multiple)
    Hp: int   # padded hidden size (128 multiple)
    tm: int   # batch tile
    tnh: int  # per-gate hidden tile width


def gru_geometry(batch, input_size, hidden_size):
    Ip = _round_up(max(input_size, 1), 128)
    Hp = _round_up(max(hidden_size, 1), 128)

    # Prefer >= 2 hidden tiles when possible (v7x megacore split of the
    # hidden axis); 256-wide tiles for large hidden dims (v6e/v7x MXU N=256).
    if Hp <= 128:
        tnh = Hp
    elif Hp == 256:
        tnh = 128
    elif Hp % 256 == 0:
        tnh = 256
    else:
        tnh = 128

    Bp = _round_up(max(batch, 1), 8)
    if Bp > 256:
        # Fill the 256 systolic rows of the v6e/v7x MXU for large batches.
        # TODO(synk): prefer tm=128 on v5e (4x128x128 MXU).
        Bp = _round_up(Bp, 256)
        tm = 256
    else:
        tm = Bp

    return GRUGeom(batch, input_size, hidden_size, Bp, Ip, Hp, tm, tnh)


# ----------------------------------------------------------------------------
# One-time parameter packing (setup time, not per step)
# ----------------------------------------------------------------------------

def pack_gru_params(w_ih, w_hh, b_ih, b_hh, geom: GRUGeom, group, compute_dtype):
    """Pack (3H,I)/(3H,H) weights + biases into lane-aligned fused operands.

    Returns:
      wx: (Ip, 3*Hp)  columns grouped per hidden tile j as [r_j | z_j | in_j]
      wh: (Hp, 3*Hp)  columns grouped per hidden tile j as [r_j | z_j | hn_j]
      b1: (1, 3*Hp)   [b_ir+b_hr | b_iz+b_hz | b_in]   (f32)
      b2: (1, 3*Hp)   [0         | 0         | b_hn]   (f32)
    `group` is the per-gate column-group width: geom.tnh for the tiled cell
    kernel, geom.Hp for the weight-resident sequence kernel.
    """
    I, H, Ip, Hp = geom.I, geom.H, geom.Ip, geom.Hp
    assert Hp % group == 0
    nh = Hp // group

    w_ir, w_iz, w_in = w_ih[:H], w_ih[H:2 * H], w_ih[2 * H:]
    w_hr, w_hz, w_hn = w_hh[:H], w_hh[H:2 * H], w_hh[2 * H:]
    b_ir, b_iz, b_in = b_ih[:H], b_ih[H:2 * H], b_ih[2 * H:]
    b_hr, b_hz, b_hn = b_hh[:H], b_hh[H:2 * H], b_hh[2 * H:]

    def pad_t(w, rows_logical, rows_padded):  # (H, rows_logical) -> (rows_padded, Hp)
        m = jnp.zeros((rows_padded, Hp), jnp.float32)
        return m.at[:rows_logical, :H].set(w.T.astype(jnp.float32))

    def group_cols(ws):  # 3 x (R, Hp) -> (R, 3*Hp), grouped per hidden tile
        rows = ws[0].shape[0]
        stacked = jnp.stack([w.reshape(rows, nh, group) for w in ws], axis=2)
        return stacked.reshape(rows, 3 * Hp)

    wx = group_cols([pad_t(w_ir, I, Ip), pad_t(w_iz, I, Ip),
                     pad_t(w_in, I, Ip)]).astype(compute_dtype)
    wh = group_cols([pad_t(w_hr, H, Hp), pad_t(w_hz, H, Hp),
                     pad_t(w_hn, H, Hp)]).astype(compute_dtype)

    def pad_b(b):
        return jnp.zeros((Hp,), jnp.float32).at[:H].set(b.astype(jnp.float32))

    def group_b(bs):  # 3 x (Hp,) -> (1, 3*Hp)
        return jnp.stack([b.reshape(nh, group) for b in bs], axis=1).reshape(1, 3 * Hp)

    zeros_h = jnp.zeros((Hp,), jnp.float32)
    b1 = group_b([pad_b(b_ir + b_hr), pad_b(b_iz + b_hz), pad_b(b_in)])
    b2 = group_b([zeros_h, zeros_h, pad_b(b_hn)])
    return wx, wh, b1, b2


# ----------------------------------------------------------------------------
# Kernels
# ----------------------------------------------------------------------------

def gru_cell_kernel(x_ref, h_ref, ht_ref, wx_ref, wh_ref, b1_ref, b2_ref,
                    out_ref, acc1_ref, acc2_ref):
    """One GRU step for one (hidden tile, batch tile) block.

    x_ref  : (tm, Ip)      input slice
    h_ref  : (tm, Hp)      full previous hidden state (contraction operand)
    ht_ref : (tm, tnh)     hidden-tile slice of h_prev (epilogue operand)
    wx_ref : (Ip, 3*tnh)   packed [r|z|in] input weights for this hidden tile
    wh_ref : (Hp, 3*tnh)   packed [r|z|hn] hidden weights for this hidden tile
    b1_ref : (1, 3*tnh)    [b_ir+b_hr | b_iz+b_hz | b_in]  f32
    b2_ref : (1, 3*tnh)    [0 | 0 | b_hn]                  f32
    out_ref: (tm, tnh)     new hidden state tile
    acc*_ref: (tm, 3*tnh)  f32 VMEM accumulators (bias-initialized)
    """
    g = out_ref.shape[-1]

    acc1_ref[...] = jnp.broadcast_to(b1_ref[...], acc1_ref.shape)
    acc1_ref[...] += jnp.dot(x_ref[...].astype(wx_ref.dtype), wx_ref[...],
                             preferred_element_type=jnp.float32)
    acc2_ref[...] = jnp.broadcast_to(b2_ref[...], acc2_ref.shape)
    acc2_ref[...] += jnp.dot(h_ref[...].astype(wh_ref.dtype), wh_ref[...],
                             preferred_element_type=jnp.float32)

    # Epilogue: slice per gate straight from the VMEM accumulators.
    r = jax.nn.sigmoid(acc1_ref[:, :g] + acc2_ref[:, :g])
    z = jax.nn.sigmoid(acc1_ref[:, g:2 * g] + acc2_ref[:, g:2 * g])
    n = jnp.tanh(r * acc2_ref[:, 2 * g:] + acc1_ref[:, 2 * g:])
    h_prev = ht_ref[...].astype(jnp.float32)
    out_ref[...] = (n + z * (h_prev - n)).astype(out_ref.dtype)


def gru_seq_kernel(x_ref, h0_ref, wx_ref, wh_ref, b1_ref, b2_ref,
                   out_ref, acc1_ref, acc2_ref, hc_ref):
    """One timestep of a sequence; weights stay VMEM-resident across grid=(T,).

    x_ref  : (Bp, Ip)   input at timestep t
    h0_ref : (Bp, Hp)   initial hidden state
    wx_ref : (Ip, 3*Hp) packed [r|z|in] weights (t-invariant -> resident)
    wh_ref : (Hp, 3*Hp) packed [r|z|hn] weights (t-invariant -> resident)
    out_ref: (Bp, Hp)   hidden state at timestep t
    hc_ref : (Bp, Hp)   f32 VMEM carry of the hidden state across timesteps
    """
    t = pl.program_id(0)
    Hp = out_ref.shape[-1]

    @pl.when(t == 0)
    def _():
        hc_ref[...] = h0_ref[...].astype(jnp.float32)

    h_prev = hc_ref[...]

    acc1_ref[...] = jnp.broadcast_to(b1_ref[...], acc1_ref.shape)
    acc1_ref[...] += jnp.dot(x_ref[...].astype(wx_ref.dtype), wx_ref[...],
                             preferred_element_type=jnp.float32)
    acc2_ref[...] = jnp.broadcast_to(b2_ref[...], acc2_ref.shape)
    acc2_ref[...] += jnp.dot(h_prev.astype(wh_ref.dtype), wh_ref[...],
                             preferred_element_type=jnp.float32)

    r = jax.nn.sigmoid(acc1_ref[:, :Hp] + acc2_ref[:, :Hp])
    z = jax.nn.sigmoid(acc1_ref[:, Hp:2 * Hp] + acc2_ref[:, Hp:2 * Hp])
    n = jnp.tanh(r * acc2_ref[:, 2 * Hp:] + acc1_ref[:, 2 * Hp:])
    h_new = n + z * (h_prev - n)
    hc_ref[...] = h_new
    out_ref[...] = h_new.astype(out_ref.dtype)


# ----------------------------------------------------------------------------
# Wrappers
# ----------------------------------------------------------------------------

def _maybe_pad2(a, rows, cols):
    if a.shape == (rows, cols):
        return a
    return jnp.zeros((rows, cols), a.dtype).at[:a.shape[0], :a.shape[1]].set(a)


def _vmem_limit(est_bytes):
    # Headroom over the double-buffered estimate; cap at 64 MiB (safe on
    # v5e/v6e 128 MiB and v7x 64 MiB physical VMEM).
    return int(min(max(est_bytes + (4 << 20), 32 << 20), 64 << 20))


def gru_cell_packed(x, h, packed, geom: GRUGeom):
    """Single GRU step with pre-packed (setup-time) parameters."""
    wx, wh, b1, b2 = packed
    B, I, H = geom.B, geom.I, geom.H
    Bp, Ip, Hp, tm, tnh = geom.Bp, geom.Ip, geom.Hp, geom.tm, geom.tnh

    x_p = _maybe_pad2(x, Bp, Ip)   # no-op when already aligned
    h_p = _maybe_pad2(h, Bp, Hp)

    nh, nb = Hp // tnh, Bp // tm
    wsz = wx.dtype.itemsize
    est = 2 * (tm * Ip * x_p.dtype.itemsize
               + tm * Hp * h_p.dtype.itemsize
               + tm * tnh * h_p.dtype.itemsize
               + (Ip + Hp) * 3 * tnh * wsz
               + 2 * 3 * tnh * 4
               + tm * tnh * h.dtype.itemsize) + 2 * tm * 3 * tnh * 4

    # Hidden tiles OUTER, batch tiles inner: weight block indices are
    # invariant along the inner axis, so weights are not re-streamed per
    # batch tile.
    out = pl.pallas_call(
        gru_cell_kernel,
        out_shape=jax.ShapeDtypeStruct((Bp, Hp), h.dtype),
        grid_spec=pltpu.PrefetchScalarGridSpec(
            num_scalar_prefetch=0,
            grid=(nh, nb),
            in_specs=[
                pl.BlockSpec((tm, Ip), lambda j, b: (b, 0)),        # x
                pl.BlockSpec((tm, Hp), lambda j, b: (b, 0)),        # h (contraction)
                pl.BlockSpec((tm, tnh), lambda j, b: (b, j)),       # h (epilogue tile)
                pl.BlockSpec((Ip, 3 * tnh), lambda j, b: (0, j)),   # wx
                pl.BlockSpec((Hp, 3 * tnh), lambda j, b: (0, j)),   # wh
                pl.BlockSpec((1, 3 * tnh), lambda j, b: (0, j)),    # b1
                pl.BlockSpec((1, 3 * tnh), lambda j, b: (0, j)),    # b2
            ],
            out_specs=pl.BlockSpec((tm, tnh), lambda j, b: (b, j)),
            scratch_shapes=[pltpu.VMEM((tm, 3 * tnh), jnp.float32),
                            pltpu.VMEM((tm, 3 * tnh), jnp.float32)],
        ),
        compiler_params=pltpu.CompilerParams(
            dimension_semantics=("parallel", "parallel"),
            vmem_limit_bytes=_vmem_limit(est)),
    )(x_p, h_p, h_p, wx, wh, b1, b2)

    if (Bp, Hp) != (B, H):
        out = out[:B, :H]
    return out


def gru_cell_v2(x, h, w_ih, w_hh, b_ih, b_hh, compute_dtype=jnp.bfloat16):
    """Convenience single-step forward matching GRUCellV2.forward.

    Packs parameters per call; for repeated stepping, call pack_gru_params
    once and use gru_cell_packed, or use gru_sequence for whole sequences.
    """
    B, I = x.shape
    H = h.shape[-1]
    geom = gru_geometry(B, I, H)
    packed = pack_gru_params(w_ih, w_hh, b_ih, b_hh, geom, geom.tnh, compute_dtype)
    return gru_cell_packed(x, h, packed, geom)


def gru_sequence_packed(x_seq, h0, packed, geom: GRUGeom):
    """Run T GRU steps inside ONE pallas_call with weights VMEM-resident."""
    wx, wh, b1, b2 = packed
    T = x_seq.shape[0]
    B, I, H = geom.B, geom.I, geom.H
    Bp, Ip, Hp = geom.Bp, geom.Ip, geom.Hp

    if x_seq.shape != (T, Bp, Ip):
        xs = jnp.zeros((T, Bp, Ip), x_seq.dtype).at[:, :B, :I].set(x_seq)
    else:
        xs = x_seq
    h0_p = _maybe_pad2(h0, Bp, Hp)

    wsz = wx.dtype.itemsize
    est = (2 * (Bp * Ip * xs.dtype.itemsize + Bp * Hp * h0_p.dtype.itemsize
                + 2 * 3 * Hp * 4 + Bp * Hp * h0.dtype.itemsize)
           + 2 * (Ip + Hp) * 3 * Hp * wsz
           + 2 * Bp * 3 * Hp * 4 + Bp * Hp * 4)

    out = pl.pallas_call(
        gru_seq_kernel,
        out_shape=jax.ShapeDtypeStruct((T, Bp, Hp), h0.dtype),
        grid_spec=pltpu.PrefetchScalarGridSpec(
            num_scalar_prefetch=0,
            grid=(T,),
            in_specs=[
                pl.BlockSpec((None, Bp, Ip), lambda t: (t, 0, 0)),  # x_t
                pl.BlockSpec((Bp, Hp), lambda t: (0, 0)),           # h0
                pl.BlockSpec((Ip, 3 * Hp), lambda t: (0, 0)),       # wx (resident)
                pl.BlockSpec((Hp, 3 * Hp), lambda t: (0, 0)),       # wh (resident)
                pl.BlockSpec((1, 3 * Hp), lambda t: (0, 0)),        # b1
                pl.BlockSpec((1, 3 * Hp), lambda t: (0, 0)),        # b2
            ],
            out_specs=pl.BlockSpec((None, Bp, Hp), lambda t: (t, 0, 0)),
            scratch_shapes=[pltpu.VMEM((Bp, 3 * Hp), jnp.float32),
                            pltpu.VMEM((Bp, 3 * Hp), jnp.float32),
                            pltpu.VMEM((Bp, Hp), jnp.float32)],
        ),
        compiler_params=pltpu.CompilerParams(
            dimension_semantics=("arbitrary",),
            vmem_limit_bytes=_vmem_limit(est)),
    )(xs, h0_p, wx, wh, b1, b2)

    if (Bp, Hp) != (B, H):
        out = out[:, :B, :H]
    return out


def gru_sequence(x_seq, h0, w_ih, w_hh, b_ih, b_hh, compute_dtype=jnp.bfloat16):
    """Full-sequence GRU (returns all hidden states, shape (T, B, H))."""
    _, B, I = x_seq.shape
    H = h0.shape[-1]
    geom = gru_geometry(B, I, H)
    packed = pack_gru_params(w_ih, w_hh, b_ih, b_hh, geom, geom.Hp, compute_dtype)
    return gru_sequence_packed(x_seq, h0, packed, geom)


# ----------------------------------------------------------------------------
# Pure-JAX reference (matches the PyTorch forward exactly)
# ----------------------------------------------------------------------------

def gru_cell_ref(x, h, w_ih, w_hh, b_ih, b_hh):
    gi = x @ w_ih.T + b_ih
    gh = h @ w_hh.T + b_hh
    H = h.shape[-1]
    i_r, i_z, i_n = gi[:, :H], gi[:, H:2 * H], gi[:, 2 * H:]
    h_r, h_z, h_n = gh[:, :H], gh[:, H:2 * H], gh[:, 2 * H:]
    r = jax.nn.sigmoid(h_r + i_r)
    z = jax.nn.sigmoid(h_z + i_z)
    n = jnp.tanh(r * h_n + i_n)
    return (1.0 - z) * n + z * h


# ----------------------------------------------------------------------------
# Test
# ----------------------------------------------------------------------------

if __name__ == "__main__":
    B, I, H, T = 2, 16, 32, 8
    dtype = jnp.float32

    key = jax.random.PRNGKey(0)
    k_wih, k_whh, k_bih, k_bhh, k_x, k_h, k_xs = jax.random.split(key, 7)

    K = 1.0 / math.sqrt(H)
    w_ih = jax.random.uniform(k_wih, (3 * H, I), dtype, minval=-K, maxval=K)
    w_hh = jax.random.uniform(k_whh, (3 * H, H), dtype, minval=-K, maxval=K)
    b_ih = jax.random.uniform(k_bih, (3 * H,), dtype, minval=-K, maxval=K)
    b_hh = jax.random.uniform(k_bhh, (3 * H,), dtype, minval=-K, maxval=K)

    x = jax.random.normal(k_x, (B, I), dtype)
    h = jax.random.normal(k_h, (B, H), dtype)
    x_seq = jax.random.normal(k_xs, (T, B, I), dtype)

    # --- single-step cell -----------------------------------------------
    ref = gru_cell_ref(x, h, w_ih, w_hh, b_ih, b_hh)

    out_f32 = jax.block_until_ready(
        gru_cell_v2(x, h, w_ih, w_hh, b_ih, b_hh, compute_dtype=jnp.float32))
    assert out_f32.shape == (B, H)
    assert jnp.allclose(out_f32, ref, atol=1e-2, rtol=1e-2), "cell f32 mismatch"

    geom = gru_geometry(B, I, H)
    packed_bf16 = pack_gru_params(w_ih, w_hh, b_ih, b_hh, geom, geom.tnh,
                                  jnp.bfloat16)
    out_bf16 = jax.block_until_ready(gru_cell_packed(x, h, packed_bf16, geom))
    assert out_bf16.shape == (B, H)
    assert jnp.allclose(out_bf16, ref, atol=3e-2, rtol=3e-2), "cell bf16 mismatch"

    # --- full sequence (weights VMEM-resident across timesteps) ----------
    def _step(hh, xx):
        hn = gru_cell_ref(xx, hh, w_ih, w_hh, b_ih, b_hh)
        return hn, hn

    _, ref_seq = jax.lax.scan(_step, h, x_seq)

    seq_f32 = jax.block_until_ready(
        gru_sequence(x_seq, h, w_ih, w_hh, b_ih, b_hh, compute_dtype=jnp.float32))
    assert seq_f32.shape == (T, B, H)
    assert jnp.allclose(seq_f32, ref_seq, atol=1e-2, rtol=1e-2), "seq f32 mismatch"

    seq_bf16 = jax.block_until_ready(
        gru_sequence(x_seq, h, w_ih, w_hh, b_ih, b_hh, compute_dtype=jnp.bfloat16))
    assert seq_bf16.shape == (T, B, H)
    assert jnp.allclose(seq_bf16, ref_seq, atol=1e-1, rtol=1e-1), "seq bf16 mismatch"

    print("KERNEL_OK")
</pallas_src>

<mosaic_0001>
module attributes {stable_mosaic.version = 11 : i64} {
  func.func @gru_cell_kernel(%arg0: i32, %arg1: i32, %arg2: memref<8x128xf32, #tpu.memory_space<vmem>>, %arg3: memref<8x128xf32, #tpu.memory_space<vmem>>, %arg4: memref<8x128xf32, #tpu.memory_space<vmem>>, %arg5: memref<128x384xf32, #tpu.memory_space<vmem>>, %arg6: memref<128x384xf32, #tpu.memory_space<vmem>>, %arg7: memref<1x384xf32, #tpu.memory_space<vmem>>, %arg8: memref<1x384xf32, #tpu.memory_space<vmem>>, %arg9: memref<8x128xf32, #tpu.memory_space<vmem>>, %arg10: memref<8x384xf32, #tpu.memory_space<vmem>>, %arg11: memref<8x384xf32, #tpu.memory_space<vmem>>) attributes {dimension_semantics = [#tpu.dimension_semantics<parallel>, #tpu.dimension_semantics<parallel>], iteration_bounds = array<i64: 1, 1>, scalar_prefetch = 0 : i64, scratch_operands = 2 : i64, tpu.core_type = #tpu.core_type<tc>, window_params = [{transform_indices = @transform_0, window_bounds = array<i64: 8, 128>}, {transform_indices = @transform_1, window_bounds = array<i64: 8, 128>}, {transform_indices = @transform_2, window_bounds = array<i64: 8, 128>}, {transform_indices = @transform_3, window_bounds = array<i64: 128, 384>}, {transform_indices = @transform_4, window_bounds = array<i64: 128, 384>}, {transform_indices = @transform_5, window_bounds = array<i64: 1, 384>}, {transform_indices = @transform_6, window_bounds = array<i64: 1, 384>}, {transform_indices = @transform_7, window_bounds = array<i64: 8, 128>}]} {
    %c0 = arith.constant 0 : index
    %c0_0 = arith.constant 0 : index
    %0 = vector.load %arg7[%c0, %c0_0] : memref<1x384xf32, #tpu.memory_space<vmem>>, vector<1x384xf32>
    %1 = vector.shape_cast %0 : vector<1x384xf32> to vector<1x384xf32>
    %2 = vector.broadcast %1 : vector<1x384xf32> to vector<8x384xf32>
    %c0_1 = arith.constant 0 : index
    %c0_2 = arith.constant 0 : index
    %3 = vector.load %arg10[%c0_1, %c0_2] : memref<8x384xf32, #tpu.memory_space<vmem>>, vector<8x384xf32>
    tpu.vector_store %arg10[%c0_1, %c0_2], %2 {strides = array<i32>} : memref<8x384xf32, #tpu.memory_space<vmem>>, vector<8x384xf32>,
    %c0_3 = arith.constant 0 : index
    %c0_4 = arith.constant 0 : index
    %4 = vector.load %arg10[%c0_3, %c0_4] : memref<8x384xf32, #tpu.memory_space<vmem>>, vector<8x384xf32>
    %c0_5 = arith.constant 0 : index
    %c0_6 = arith.constant 0 : index
    %5 = vector.load %arg2[%c0_5, %c0_6] : memref<8x128xf32, #tpu.memory_space<vmem>>, vector<8x128xf32>
    %c0_7 = arith.constant 0 : index
    %c0_8 = arith.constant 0 : index
    %6 = vector.load %arg5[%c0_7, %c0_8] : memref<128x384xf32, #tpu.memory_space<vmem>>, vector<128x384xf32>
    %cst = arith.constant dense<0.000000e+00> : vector<8x384xf32>
    %7 = tpu.matmul %5, %6, %cst {dimension_numbers = #tpu.dot_dimension_numbers<[1], [0], [0], [1], [0, 0, 1, 1], [], []>} : vector<8x128xf32>, vector<128x384xf32>, vector<8x384xf32> -> vector<8x384xf32>
    %8 = arith.addf %4, %7 : vector<8x384xf32>
    %c0_9 = arith.constant 0 : index
    %c0_10 = arith.constant 0 : index
    %9 = vector.load %arg10[%c0_9, %c0_10] : memref<8x384xf32, #tpu.memory_space<vmem>>, vector<8x384xf32>
    tpu.vector_store %arg10[%c0_9, %c0_10], %8 {strides = array<i32>} : memref<8x384xf32, #tpu.memory_space<vmem>>, vector<8x384xf32>,
    %c0_11 = arith.constant 0 : index
    %c0_12 = arith.constant 0 : index
    %10 = vector.load %arg8[%c0_11, %c0_12] : memref<1x384xf32, #tpu.memory_space<vmem>>, vector<1x384xf32>
    %11 = vector.shape_cast %10 : vector<1x384xf32> to vector<1x384xf32>
    %12 = vector.broadcast %11 : vector<1x384xf32> to vector<8x384xf32>
    %c0_13 = arith.constant 0 : index
    %c0_14 = arith.constant 0 : index
    %13 = vector.load %arg11[%c0_13, %c0_14] : memref<8x384xf32, #tpu.memory_space<vmem>>, vector<8x384xf32>
    tpu.vector_store %arg11[%c0_13, %c0_14], %12 {strides = array<i32>} : memref<8x384xf32, #tpu.memory_space<vmem>>, vector<8x384xf32>,
    %c0_15 = arith.constant 0 : index
    %c0_16 = arith.constant 0 : index
    %14 = vector.load %arg11[%c0_15, %c0_16] : memref<8x384xf32, #tpu.memory_space<vmem>>, vector<8x384xf32>
    %c0_17 = arith.constant 0 : index
    %c0_18 = arith.constant 0 : index
    %15 = vector.load %arg3[%c0_17, %c0_18] : memref<8x128xf32, #tpu.memory_space<vmem>>, vector<8x128xf32>
    %c0_19 = arith.constant 0 : index
    %c0_20 = arith.constant 0 : index
    %16 = vector.load %arg6[%c0_19, %c0_20] : memref<128x384xf32, #tpu.memory_space<vmem>>, vector<128x384xf32>
    %cst_21 = arith.constant dense<0.000000e+00> : vector<8x384xf32>
    %17 = tpu.matmul %15, %16, %cst_21 {dimension_numbers = #tpu.dot_dimension_numbers<[1], [0], [0], [1], [0, 0, 1, 1], [], []>} : vector<8x128xf32>, vector<128x384xf32>, vector<8x384xf32> -> vector<8x384xf32>
    %18 = arith.addf %14, %17 : vector<8x384xf32>
    %c0_22 = arith.constant 0 : index
    %c0_23 = arith.constant 0 : index
    %19 = vector.load %arg11[%c0_22, %c0_23] : memref<8x384xf32, #tpu.memory_space<vmem>>, vector<8x384xf32>
    tpu.vector_store %arg11[%c0_22, %c0_23], %18 {strides = array<i32>} : memref<8x384xf32, #tpu.memory_space<vmem>>, vector<8x384xf32>,
    %c0_24 = arith.constant 0 : index
    %c0_25 = arith.constant 0 : index
    %20 = vector.load %arg10[%c0_24, %c0_25] : memref<8x384xf32, #tpu.memory_space<vmem>>, vector<8x128xf32>
    %c0_26 = arith.constant 0 : index
    %c0_27 = arith.constant 0 : index
    %21 = vector.load %arg11[%c0_26, %c0_27] : memref<8x384xf32, #tpu.memory_space<vmem>>, vector<8x128xf32>
    %22 = arith.addf %20, %21 : vector<8x128xf32>
    %23 = arith.negf %22 : vector<8x128xf32>
    %24 = math.exp %23 : vector<8x128xf32>
    %cst_28 = arith.constant 1.000000e+00 : f32
    %25 = vector.broadcast %cst_28 : f32 to vector<8x128xf32>
    %26 = arith.addf %25, %24 : vector<8x128xf32>
    %27 = arith.divf %25, %26 : vector<8x128xf32>
    %c0_29 = arith.constant 0 : index
    %c128 = arith.constant 128 : index
    %28 = vector.load %arg10[%c0_29, %c128] : memref<8x384xf32, #tpu.memory_space<vmem>>, vector<8x128xf32>
    %c0_30 = arith.constant 0 : index
    %c128_31 = arith.constant 128 : index
    %29 = vector.load %arg11[%c0_30, %c128_31] : memref<8x384xf32, #tpu.memory_space<vmem>>, vector<8x128xf32>
    %30 = arith.addf %28, %29 : vector<8x128xf32>
    %31 = arith.negf %30 : vector<8x128xf32>
    %32 = math.exp %31 : vector<8x128xf32>
    %cst_32 = arith.constant 1.000000e+00 : f32
    %33 = vector.broadcast %cst_32 : f32 to vector<8x128xf32>
    %34 = arith.addf %33, %32 : vector<8x128xf32>
    %35 = arith.divf %33, %34 : vector<8x128xf32>
    %c0_33 = arith.constant 0 : index
    %c256 = arith.constant 256 : index
    %36 = vector.load %arg11[%c0_33, %c256] : memref<8x384xf32, #tpu.memory_space<vmem>>, vector<8x128xf32>
    %37 = arith.mulf %27, %36 : vector<8x128xf32>
    %c0_34 = arith.constant 0 : index
    %c256_35 = arith.constant 256 : index
    %38 = vector.load %arg10[%c0_34, %c256_35] : memref<8x384xf32, #tpu.memory_space<vmem>>, vector<8x128xf32>
    %39 = arith.addf %37, %38 : vector<8x128xf32>
    %40 = math.tanh %39 : vector<8x128xf32>
    %c0_36 = arith.constant 0 : index
    %c0_37 = arith.constant 0 : index
    %41 = vector.load %arg4[%c0_36, %c0_37] : memref<8x128xf32, #tpu.memory_space<vmem>>, vector<8x128xf32>
    %42 = arith.subf %41, %40 : vector<8x128xf32>
    %43 = arith.mulf %35, %42 : vector<8x128xf32>
    %44 = arith.addf %40, %43 : vector<8x128xf32>
    %c0_38 = arith.constant 0 : index
    %c0_39 = arith.constant 0 : index
    %45 = vector.load %arg9[%c0_38, %c0_39] : memref<8x128xf32, #tpu.memory_space<vmem>>, vector<8x128xf32>
    tpu.vector_store %arg9[%c0_38, %c0_39], %44 {strides = array<i32>} : memref<8x128xf32, #tpu.memory_space<vmem>>, vector<8x128xf32>,
    return
  }
  func.func @transform_0(%arg0: i32, %arg1: i32) -> (i32, i32) {
    %c0_i32 = arith.constant 0 : i32
    %c0_i32_0 = arith.constant 0 : i32
    return %arg1, %c0_i32 : i32, i32
  }
  func.func @transform_1(%arg0: i32, %arg1: i32) -> (i32, i32) {
    %c0_i32 = arith.constant 0 : i32
    %c0_i32_0 = arith.constant 0 : i32
    return %arg1, %c0_i32 : i32, i32
  }
  func.func @transform_2(%arg0: i32, %arg1: i32) -> (i32, i32) {
    %c0_i32 = arith.constant 0 : i32
    return %arg1, %arg0 : i32, i32
  }
  func.func @transform_3(%arg0: i32, %arg1: i32) -> (i32, i32) {
    %c0_i32 = arith.constant 0 : i32
    %c0_i32_0 = arith.constant 0 : i32
    return %c0_i32, %arg0 : i32, i32
  }
  func.func @transform_4(%arg0: i32, %arg1: i32) -> (i32, i32) {
    %c0_i32 = arith.constant 0 : i32
    %c0_i32_0 = arith.constant 0 : i32
    return %c0_i32, %arg0 : i32, i32
  }
  func.func @transform_5(%arg0: i32, %arg1: i32) -> (i32, i32) {
    %c0_i32 = arith.constant 0 : i32
    %c0_i32_0 = arith.constant 0 : i32
    return %c0_i32, %arg0 : i32, i32
  }
  func.func @transform_6(%arg0: i32, %arg1: i32) -> (i32, i32) {
    %c0_i32 = arith.constant 0 : i32
    %c0_i32_0 = arith.constant 0 : i32
    return %c0_i32, %arg0 : i32, i32
  }
  func.func @transform_7(%arg0: i32, %arg1: i32) -> (i32, i32) {
    %c0_i32 = arith.constant 0 : i32
    return %arg1, %arg0 : i32, i32
  }
}

</mosaic_0001>

<llo_original>
// kernel: tpu_custom_call.1
$region0: #{tpu_custom_call.1}
  #allocation0 [shape = 'u32[]', space=smem, size = 0x4, offset = 0x4, fixed_abs, tag = 'smem constant byte address 0x4 - core index']
  #allocation1 [shape = 'u32[144,128]{1,0:T(1,128)}', space=vmem, size = 0x12000, scoped, tag = 'internal scratch']
  #allocation2 [shape = 'f32[8,384]{1,0:T(8,128)}', space=vmem, size = 0x3000, scoped, tag = 'scratch operand']
  #allocation3 [shape = 'f32[8,384]{1,0:T(8,128)}', space=vmem, size = 0x3000, scoped, tag = 'scratch operand']
  %s0 = inlined_call_operand.hbm [shape: f32[8,128], index: 0, kind: input, shape index: {}]
  %s1 = inlined_call_operand.hbm [shape: f32[8,128], index: 1, kind: input, shape index: {}]
  %s2 = inlined_call_operand.hbm [shape: f32[8,128], index: 2, kind: input, shape index: {}]
  %s3 = inlined_call_operand.hbm [shape: f32[128,384], index: 3, kind: input, shape index: {}]
  %s4 = inlined_call_operand.hbm [shape: f32[128,384], index: 4, kind: input, shape index: {}]
  %s5 = inlined_call_operand.vmem [shape: f32[1,384], index: 5, kind: input, shape index: {}]
  %s6 = inlined_call_operand.vmem [shape: f32[1,384], index: 6, kind: input, shape index: {}]
  %s7 = inlined_call_operand.hbm [shape: f32[8,128], index: 7, kind: output, shape index: {}]
  %s8 = sld [smem:[#allocation0]]
  $region58: #{tpu_custom_call.1} parent=0
    _
  %s10 = ssub.s32 1, %s8
  %s11 = scalar_select 0, %s10, %s8
  $region1: #{tpu_custom_call.1} parent=0
    #allocation4 [shape = 'u8[4096]{0}', space=vmem, size = 0x1000, scoped, tag = 'input window, operand 0, single buffered']
    #allocation5 [shape = 's32[1]{0}', space=sflag, size = 0x4, scoped, tag = 'scoped memory for tpu_custom_call.1']
    #allocation6 [shape = 's32[1]{0}', space=sflag, size = 0x4, scoped, tag = 'scoped memory for tpu_custom_call.1']
    #allocation7 [shape = 'u8[4096]{0}', space=vmem, size = 0x1000, scoped, tag = 'input window, operand 1, single buffered']
    #allocation8 [shape = 's32[1]{0}', space=sflag, size = 0x4, scoped, tag = 'scoped memory for tpu_custom_call.1']
    #allocation9 [shape = 'u8[4096]{0}', space=vmem, size = 0x1000, scoped, tag = 'input window, operand 2, single buffered']
    #allocation10 [shape = 'u8[196608]{0}', space=vmem, size = 0x30000, scoped, tag = 'input window, operand 3, single buffered']
    #allocation11 [shape = 's32[1]{0}', space=sflag, size = 0x4, scoped, tag = 'scoped memory for tpu_custom_call.1']
    #allocation12 [shape = 'u8[196608]{0}', space=vmem, size = 0x30000, scoped, tag = 'input window, operand 4, single buffered']
    #allocation13 [shape = 'u8[4096]{0}', space=vmem, size = 0x1000, scoped, tag = 'output window, operand 0, single buffered']
    %12 = vsyncpa [#allocation5], 0
    %13 = vsyncpa [#allocation8], 0
    %14 = vsyncpa [#allocation11], 0
    %15 = vsyncpa [#allocation6], 0
    // Predicated region
    $region2: #{tpu_custom_call.1} parent=1 // pred_check
      _
    $region3: #{tpu_custom_call.1} parent=1 // pred_check_branch
      %17 = sbr.rel (0) target = $region5
    $region4: #{tpu_custom_call.1} parent=1 // pred_region
      %s19 = ssub.s32 128, 128
      %20 = vsyncadd [#allocation5], %s19
      %s22 = sshll.u32 [#allocation4], 4
      %s23 = int_to_ptr.vmem [resolvable:$true] %s22
      %25 = dma.hbm_to_vmem [thread:$0]  %s0, 128, %s23, [#allocation5]
    $region5: #{tpu_custom_call.1} parent=1 // pred_fallthru
      _
    // Predicated region
    $region6: #{tpu_custom_call.1} parent=1 // pred_check
      _
    $region7: #{tpu_custom_call.1} parent=1 // pred_check_branch
      %27 = sbr.rel (0) target = $region9
    $region8: #{tpu_custom_call.1} parent=1 // pred_region
      %s29 = ssub.s32 128, 128
      %30 = vsyncadd [#allocation8], %s29
      %s32 = sshll.u32 [#allocation7], 4
      %s33 = int_to_ptr.vmem [resolvable:$true] %s32
      %35 = dma.hbm_to_vmem [thread:$0]  %s1, 128, %s33, [#allocation8]
    $region9: #{tpu_custom_call.1} parent=1 // pred_fallthru
      _
    // Predicated region
    $region10: #{tpu_custom_call.1} parent=1 // pred_check
      _
    $region11: #{tpu_custom_call.1} parent=1 // pred_check_branch
      %37 = sbr.rel (0) target = $region13
    $region12: #{tpu_custom_call.1} parent=1 // pred_region
      %s39 = ssub.s32 128, 128
      %40 = vsyncadd [#allocation8], %s39
      %s42 = sshll.u32 [#allocation9], 4
      %s43 = int_to_ptr.vmem [resolvable:$true] %s42
      %45 = dma.hbm_to_vmem [thread:$0]  %s2, 128, %s43, [#allocation8]
    $region13: #{tpu_custom_call.1} parent=1 // pred_fallthru
      _
    // Predicated region
    $region14: #{tpu_custom_call.1} parent=1 // pred_check
      _
    $region15: #{tpu_custom_call.1} parent=1 // pred_check_branch
      %47 = sbr.rel (0) target = $region17
    $region16: #{tpu_custom_call.1} parent=1 // pred_region
      %s49 = ssub.s32 6144, 6144
      %50 = vsyncadd [#allocation11], %s49
      %s51 = sshll.u32 [#allocation10], 4
      %s52 = int_to_ptr.vmem [resolvable:$true] %s51
      %57 = dma.hbm_to_vmem [thread:$0]  %s3, 6144, %s52, [#allocation11], 384, 384, 24
    $region17: #{tpu_custom_call.1} parent=1 // pred_fallthru
      _
    // Predicated region
    $region18: #{tpu_custom_call.1} parent=1 // pred_check
      _
    $region19: #{tpu_custom_call.1} parent=1 // pred_check_branch
      %59 = sbr.rel (0) target = $region21
    $region20: #{tpu_custom_call.1} parent=1 // pred_region
      %s61 = ssub.s32 6144, 6144
      %62 = vsyncadd [#allocation11], %s61
      %s63 = sshll.u32 [#allocation12], 4
      %s64 = int_to_ptr.vmem [resolvable:$true] %s63
      %69 = dma.hbm_to_vmem [thread:$0]  %s4, 6144, %s64, [#allocation11], 384, 384, 24
    $region21: #{tpu_custom_call.1} parent=1 // pred_fallthru
      _
    // Predicated region
    $region22: #{tpu_custom_call.1} parent=1 // pred_check
      _
    $region23: #{tpu_custom_call.1} parent=1 // pred_check_branch
      %71 = sbr.rel (0) target = $region25
    $region24: #{tpu_custom_call.1} parent=1 // pred_region
      _
    $region25: #{tpu_custom_call.1} parent=1 // pred_fallthru
      _
    // Predicated region
    $region26: #{tpu_custom_call.1} parent=1 // pred_check
      _
    $region27: #{tpu_custom_call.1} parent=1 // pred_check_branch
      %73 = sbr.rel (0) target = $region29
    $region28: #{tpu_custom_call.1} parent=1 // pred_region
      _
    $region29: #{tpu_custom_call.1} parent=1 // pred_fallthru
      _
    // Predicated region
    $region30: #{tpu_custom_call.1} parent=1 // pred_check
      _
    $region31: #{tpu_custom_call.1} parent=1 // pred_check_branch
      %75 = sbr.rel (0) target = $region33
    $region32: #{tpu_custom_call.1} parent=1 // pred_region
      %76 = dma.done [#allocation5], 128
    $region33: #{tpu_custom_call.1} parent=1 // pred_fallthru
      _
    // Predicated region
    $region34: #{tpu_custom_call.1} parent=1 // pred_check
      _
    $region35: #{tpu_custom_call.1} parent=1 // pred_check_branch
      %78 = sbr.rel (0) target = $region37
    $region36: #{tpu_custom_call.1} parent=1 // pred_region
      %79 = dma.done [#allocation8], 128
    $region37: #{tpu_custom_call.1} parent=1 // pred_fallthru
      _
    // Predicated region
    $region38: #{tpu_custom_call.1} parent=1 // pred_check
      _
    $region39: #{tpu_custom_call.1} parent=1 // pred_check_branch
      %81 = sbr.rel (0) target = $region41
    $region40: #{tpu_custom_call.1} parent=1 // pred_region
      %82 = dma.done [#allocation8], 128
    $region41: #{tpu_custom_call.1} parent=1 // pred_fallthru
      _
    // Predicated region
    $region42: #{tpu_custom_call.1} parent=1 // pred_check
      _
    $region43: #{tpu_custom_call.1} parent=1 // pred_check_branch
      %84 = sbr.rel (0) target = $region45
    $region44: #{tpu_custom_call.1} parent=1 // pred_region
      %85 = dma.done [#allocation11], 6144
    $region45: #{tpu_custom_call.1} parent=1 // pred_fallthru
      _
    // Predicated region
    $region46: #{tpu_custom_call.1} parent=1 // pred_check
      _
    $region47: #{tpu_custom_call.1} parent=1 // pred_check_branch
      %87 = sbr.rel (0) target = $region49
    $region48: #{tpu_custom_call.1} parent=1 // pred_region
      %88 = dma.done [#allocation11], 6144
    $region49: #{tpu_custom_call.1} parent=1 // pred_fallthru
      _
    %v89 = vld [vmem:[%s5] sm:$0x7]
    %v91 = vlaneseq
    %v92 = vshrl.u32 %v91, 7
    %v93 = vsub.s32 0, %v92
    %v94 = vrot.slane %v89, %v93
    %v95 = vlaneseq
    %v96 = vshrl.u32 %v95, 7
    %v97 = vsub.s32 1, %v96
    %v98 = vrot.slane %v89, %v97
    %v99 = vlaneseq
    %v100 = vshrl.u32 %v99, 7
    %v101 = vsub.s32 2, %v100
    %v102 = vrot.slane %v89, %v101
    %106 = vst [vmem:[#allocation2] sm:$0xff] %v94
    %107 = vst [vmem:[#allocation2 + $0x8] sm:$0xff] %v98
    %108 = vst [vmem:[#allocation2 + $0x10] sm:$0xff] %v102
    %v109 = vld [vmem:[#allocation2] sm:$0xff]
    %v110 = vld [vmem:[#allocation2 + $0x8] sm:$0xff]
    %v111 = vld [vmem:[#allocation2 + $0x10] sm:$0xff]
    %v112 = vld [vmem:[#allocation4] sm:$0xff]
    %v113 = vld [vmem:[#allocation10] sm:$0xff]
    %v114 = vld [vmem:[#allocation10 + $0x8] sm:$0xff]
    %v115 = vld [vmem:[#allocation10 + $0x10] sm:$0xff]
    %v116 = vld [vmem:[#allocation10 + $0x18] sm:$0xff]
    %v117 = vld [vmem:[#allocation10 + $0x20] sm:$0xff]
    %v118 = vld [vmem:[#allocation10 + $0x28] sm:$0xff]
    %v119 = vld [vmem:[#allocation10 + $0x30] sm:$0xff]
    %v120 = vld [vmem:[#allocation10 + $0x38] sm:$0xff]
    %v121 = vld [vmem:[#allocation10 + $0x40] sm:$0xff]
    %v122 = vld [vmem:[#allocation10 + $0x48] sm:$0xff]
    %v123 = vld [vmem:[#allocation10 + $0x50] sm:$0xff]
    %v124 = vld [vmem:[#allocation10 + $0x58] sm:$0xff]
    %v125 = vld [vmem:[#allocation10 + $0x60] sm:$0xff]
    %v126 = vld [vmem:[#allocation10 + $0x68] sm:$0xff]
    %v127 = vld [vmem:[#allocation10 + $0x70] sm:$0xff]
    %v128 = vld [vmem:[#allocation10 + $0x78] sm:$0xff]
    %v129 = vld [vmem:[#allocation10 + $0x80] sm:$0xff]
    %v130 = vld [vmem:[#allocation10 + $0x88] sm:$0xff]
    %v131 = vld [vmem:[#allocation10 + $0x90] sm:$0xff]
    %v132 = vld [vmem:[#allocation10 + $0x98] sm:$0xff]
    %v133 = vld [vmem:[#allocation10 + $0xa0] sm:$0xff]
    %v134 = vld [vmem:[#allocation10 + $0xa8] sm:$0xff]
    %v135 = vld [vmem:[#allocation10 + $0xb0] sm:$0xff]
    %v136 = vld [vmem:[#allocation10 + $0xb8] sm:$0xff]
    %v137 = vld [vmem:[#allocation10 + $0xc0] sm:$0xff]
    %v138 = vld [vmem:[#allocation10 + $0xc8] sm:$0xff]
    %v139 = vld [vmem:[#allocation10 + $0xd0] sm:$0xff]
    %v140 = vld [vmem:[#allocation10 + $0xd8] sm:$0xff]
    %v141 = vld [vmem:[#allocation10 + $0xe0] sm:$0xff]
    %v142 = vld [vmem:[#allocation10 + $0xe8] sm:$0xff]
    %v143 = vld [vmem:[#allocation10 + $0xf0] sm:$0xff]
    %v144 = vld [vmem:[#allocation10 + $0xf8] sm:$0xff]
    %v145 = vld [vmem:[#allocation10 + $0x100] sm:$0xff]
    %v146 = vld [vmem:[#allocation10 + $0x108] sm:$0xff]
    %v147 = vld [vmem:[#allocation10 + $0x110] sm:$0xff]
    %v148 = vld [vmem:[#allocation10 + $0x118] sm:$0xff]
    %v149 = vld [vmem:[#allocation10 + $0x120] sm:$0xff]
    %v150 = vld [vmem:[#allocation10 + $0x128] sm:$0xff]
    %v151 = vld [vmem:[#allocation10 + $0x130] sm:$0xff]
    %v152 = vld [vmem:[#allocation10 + $0x138] sm:$0xff]
    %v153 = vld [vmem:[#allocation10 + $0x140] sm:$0xff]
    %v154 = vld [vmem:[#allocation10 + $0x148] sm:$0xff]
    %v155 = vld [vmem:[#allocation10 + $0x150] sm:$0xff]
    %v156 = vld [vmem:[#allocation10 + $0x158] sm:$0xff]
    %v157 = vld [vmem:[#allocation10 + $0x160] sm:$0xff]
    %v158 = vld [vmem:[#allocation10 + $0x168] sm:$0xff]
    %v159 = vld [vmem:[#allocation10 + $0x170] sm:$0xff]
    %v160 = vld [vmem:[#allocation10 + $0x178] sm:$0xff]
    %161 = vmatprep.subr.mxu0 %v114
    %162 = vmatpush1.msra.mxu0 %v113
    %163 = vmatprep.subr.mxu0 %v117
    %164 = vmatpush1.msra.mxu0 %v116
    %165 = vmatprep.subr.mxu0 %v120
    %166 = vmatpush1.msra.mxu0 %v119
    %167 = vmatprep.subr.mxu0 %v123
    %168 = vmatpush1.msra.mxu0 %v122
    %169 = vmatprep.subr.mxu0 %v126
    %170 = vmatpush1.msra.mxu0 %v125
    %171 = vmatprep.subr.mxu0 %v129
    %172 = vmatpush1.msra.mxu0 %v128
    %173 = vmatprep.subr.mxu0 %v132
    %174 = vmatpush1.msra.mxu0 %v131
    %175 = vmatprep.subr.mxu0 %v135
    %176 = vmatpush1.msra.mxu0 %v134
    %177 = vmatprep.subr.mxu0 %v138
    %178 = vmatpush1.msra.mxu0 %v137
    %179 = vmatprep.subr.mxu0 %v141
    %180 = vmatpush1.msra.mxu0 %v140
    %181 = vmatprep.subr.mxu0 %v144
    %182 = vmatpush1.msra.mxu0 %v143
    %183 = vmatprep.subr.mxu0 %v147
    %184 = vmatpush1.msra.mxu0 %v146
    %185 = vmatprep.subr.mxu0 %v150
    %186 = vmatpush1.msra.mxu0 %v149
    %187 = vmatprep.subr.mxu0 %v153
    %188 = vmatpush1.msra.mxu0 %v152
    %189 = vmatprep.subr.mxu0 %v156
    %190 = vmatpush1.msra.mxu0 %v155
    %191 = vmatprep.subr.mxu0 %v159
    %192 = vmatpush1.msra.mxu0 %v158
    %193 = vmatprep.subr.mxu0 0.0
    %194 = vmatpush1.msra.mxu0 0.0
    %195 = vmatprep.subr.mxu0 0.0
    %196 = vmatpush1.msra.mxu0 0.0
    %197 = vmatprep.subr.mxu0 0.0
    %198 = vmatpush1.msra.mxu0 0.0
    %199 = vmatprep.subr.mxu0 0.0
    %200 = vmatpush1.msra.mxu0 0.0
    %201 = vmatprep.subr.mxu0 0.0
    %202 = vmatpush1.msra.mxu0 0.0
    %203 = vmatprep.subr.mxu0 0.0
    %204 = vmatpush1.msra.mxu0 0.0
    %205 = vmatprep.subr.mxu0 0.0
    %206 = vmatpush1.msra.mxu0 0.0
    %207 = vmatprep.subr.mxu0 0.0
    %208 = vmatpush1.msra.mxu0 0.0
    %209 = vmatprep.subr.mxu0 0.0
    %210 = vmatpush1.msra.mxu0 0.0
    %211 = vmatprep.subr.mxu0 0.0
    %212 = vmatpush1.msra.mxu0 0.0
    %213 = vmatprep.subr.mxu0 0.0
    %214 = vmatpush1.msra.mxu0 0.0
    %215 = vmatprep.subr.mxu0 0.0
    %216 = vmatpush1.msra.mxu0 0.0
    %217 = vmatprep.subr.mxu0 0.0
    %218 = vmatpush1.msra.mxu0 0.0
    %219 = vmatprep.subr.mxu0 0.0
    %220 = vmatpush1.msra.mxu0 0.0
    %221 = vmatprep.subr.mxu0 0.0
    %222 = vmatpush1.msra.mxu0 0.0
    %223 = vmatprep.subr.mxu0 0.0
    %224 = vmatpush1.msra.mxu0 0.0
    %225 = vmatprep.mubr.f32.mxu0 0.0
    %226 = vmatmul.mubr.f32.gmra.mrb[0].mxu0 %v112
    %v227 = vpop.f32.mrb[0].mxu0
    %v228 = vadd.f32 0.0, %v227
    %v229 = vpop.f32.mrb[0].mxu0
    %v230 = vadd.f32 0.0, %v229
    %231 = vdwg.mxu0
    %232 = vmatprep.subr.mxu0 0.0
    %233 = vmatpush1.msra.mxu0 %v115
    %234 = vmatprep.subr.mxu0 0.0
    %235 = vmatpush1.msra.mxu0 %v118
    %236 = vmatprep.subr.mxu0 0.0
    %237 = vmatpush1.msra.mxu0 %v121
    %238 = vmatprep.subr.mxu0 0.0
    %239 = vmatpush1.msra.mxu0 %v124
    %240 = vmatprep.subr.mxu0 0.0
    %241 = vmatpush1.msra.mxu0 %v127
    %242 = vmatprep.subr.mxu0 0.0
    %243 = vmatpush1.msra.mxu0 %v130
    %244 = vmatprep.subr.mxu0 0.0
    %245 = vmatpush1.msra.mxu0 %v133
    %246 = vmatprep.subr.mxu0 0.0
    %247 = vmatpush1.msra.mxu0 %v136
    %248 = vmatprep.subr.mxu0 0.0
    %249 = vmatpush1.msra.mxu0 %v139
    %250 = vmatprep.subr.mxu0 0.0
    %251 = vmatpush1.msra.mxu0 %v142
    %252 = vmatprep.subr.mxu0 0.0
    %253 = vmatpush1.msra.mxu0 %v145
    %254 = vmatprep.subr.mxu0 0.0
    %255 = vmatpush1.msra.mxu0 %v148
    %256 = vmatprep.subr.mxu0 0.0
    %257 = vmatpush1.msra.mxu0 %v151
    %258 = vmatprep.subr.mxu0 0.0
    %259 = vmatpush1.msra.mxu0 %v154
    %260 = vmatprep.subr.mxu0 0.0
    %261 = vmatpush1.msra.mxu0 %v157
    %262 = vmatprep.subr.mxu0 0.0
    %263 = vmatpush1.msra.mxu0 %v160
    %264 = vmatprep.subr.mxu0 0.0
    %265 = vmatpush1.msra.mxu0 0.0
    %266 = vmatprep.subr.mxu0 0.0
    %267 = vmatpush1.msra.mxu0 0.0
    %268 = vmatprep.subr.mxu0 0.0
    %269 = vmatpush1.msra.mxu0 0.0
    %270 = vmatprep.subr.mxu0 0.0
    %271 = vmatpush1.msra.mxu0 0.0
    %272 = vmatprep.subr.mxu0 0.0
    %273 = vmatpush1.msra.mxu0 0.0
    %274 = vmatprep.subr.mxu0 0.0
    %275 = vmatpush1.msra.mxu0 0.0
    %276 = vmatprep.subr.mxu0 0.0
    %277 = vmatpush1.msra.mxu0 0.0
    %278 = vmatprep.subr.mxu0 0.0
    %279 = vmatpush1.msra.mxu0 0.0
    %280 = vmatprep.subr.mxu0 0.0
    %281 = vmatpush1.msra.mxu0 0.0
    %282 = vmatprep.subr.mxu0 0.0
    %283 = vmatpush1.msra.mxu0 0.0
    %284 = vmatprep.subr.mxu0 0.0
    %285 = vmatpush1.msra.mxu0 0.0
    %286 = vmatprep.subr.mxu0 0.0
    %287 = vmatpush1.msra.mxu0 0.0
    %288 = vmatprep.subr.mxu0 0.0
    %289 = vmatpush1.msra.mxu0 0.0
    %290 = vmatprep.subr.mxu0 0.0
    %291 = vmatpush1.msra.mxu0 0.0
    %292 = vmatprep.subr.mxu0 0.0
    %293 = vmatpush1.msra.mxu0 0.0
    %294 = vmatprep.subr.mxu0 0.0
    %295 = vmatpush1.msra.mxu0 0.0
    %296 = vmatprep.mubr.f32.mxu0 0.0
    %297 = vmatmul.mubr.f32.gmra.mrb[0].mxu0 %v112
    %v298 = vpop.f32.mrb[0].mxu0
    %v299 = vadd.f32 0.0, %v298
    %v300 = vpop.f32.mrb[0].mxu0
    %301 = vdwg.mxu0
    %v302 = vadd.f32 %v109, %v228
    %v303 = vadd.f32 %v110, %v230
    %v304 = vadd.f32 %v111, %v299
    %305 = vst [vmem:[#allocation2] sm:$0xff] %v302
    %306 = vst [vmem:[#allocation2 + $0x8] sm:$0xff] %v303
    %307 = vst [vmem:[#allocation2 + $0x10] sm:$0xff] %v304
    %v308 = vld [vmem:[%s6] sm:$0x7]
    %v310 = vlaneseq
    %v311 = vshrl.u32 %v310, 7
    %v312 = vsub.s32 0, %v311
    %v313 = vrot.slane %v308, %v312
    %v314 = vlaneseq
    %v315 = vshrl.u32 %v314, 7
    %v316 = vsub.s32 1, %v315
    %v317 = vrot.slane %v308, %v316
    %v318 = vlaneseq
    %v319 = vshrl.u32 %v318, 7
    %v320 = vsub.s32 2, %v319
    %v321 = vrot.slane %v308, %v320
    %325 = vst [vmem:[#allocation3] sm:$0xff] %v313
    %326 = vst [vmem:[#allocation3 + $0x8] sm:$0xff] %v317
    %327 = vst [vmem:[#allocation3 + $0x10] sm:$0xff] %v321
    %v328 = vld [vmem:[#allocation3] sm:$0xff]
    %v329 = vld [vmem:[#allocation3 + $0x8] sm:$0xff]
    %v330 = vld [vmem:[#allocation3 + $0x10] sm:$0xff]
    %v331 = vld [vmem:[#allocation7] sm:$0xff]
    %v332 = vld [vmem:[#allocation12] sm:$0xff]
    %v333 = vld [vmem:[#allocation12 + $0x8] sm:$0xff]
    %v334 = vld [vmem:[#allocation12 + $0x10] sm:$0xff]
    %v335 = vld [vmem:[#allocation12 + $0x18] sm:$0xff]
    %v336 = vld [vmem:[#allocation12 + $0x20] sm:$0xff]
    %v337 = vld [vmem:[#allocation12 + $0x28] sm:$0xff]
    %v338 = vld [vmem:[#allocation12 + $0x30] sm:$0xff]
    %v339 = vld [vmem:[#allocation12 + $0x38] sm:$0xff]
    %v340 = vld [vmem:[#allocation12 + $0x40] sm:$0xff]
    %v341 = vld [vmem:[#allocation12 + $0x48] sm:$0xff]
    %v342 = vld [vmem:[#allocation12 + $0x50] sm:$0xff]
    %v343 = vld [vmem:[#allocation12 + $0x58] sm:$0xff]
    %v344 = vld [vmem:[#allocation12 + $0x60] sm:$0xff]
    %v345 = vld [vmem:[#allocation12 + $0x68] sm:$0xff]
    %v346 = vld [vmem:[#allocation12 + $0x70] sm:$0xff]
    %v347 = vld [vmem:[#allocation12 + $0x78] sm:$0xff]
    %v348 = vld [vmem:[#allocation12 + $0x80] sm:$0xff]
    %v349 = vld [vmem:[#allocation12 + $0x88] sm:$0xff]
    %v350 = vld [vmem:[#allocation12 + $0x90] sm:$0xff]
    %v351 = vld [vmem:[#allocation12 + $0x98] sm:$0xff]
    %v352 = vld [vmem:[#allocation12 + $0xa0] sm:$0xff]
    %v353 = vld [vmem:[#allocation12 + $0xa8] sm:$0xff]
    %v354 = vld [vmem:[#allocation12 + $0xb0] sm:$0xff]
    %v355 = vld [vmem:[#allocation12 + $0xb8] sm:$0xff]
    %v356 = vld [vmem:[#allocation12 + $0xc0] sm:$0xff]
    %v357 = vld [vmem:[#allocation12 + $0xc8] sm:$0xff]
    %v358 = vld [vmem:[#allocation12 + $0xd0] sm:$0xff]
    %v359 = vld [vmem:[#allocation12 + $0xd8] sm:$0xff]
    %v360 = vld [vmem:[#allocation12 + $0xe0] sm:$0xff]
    %v361 = vld [vmem:[#allocation12 + $0xe8] sm:$0xff]
    %v362 = vld [vmem:[#allocation12 + $0xf0] sm:$0xff]
    %v363 = vld [vmem:[#allocation12 + $0xf8] sm:$0xff]
    %v364 = vld [vmem:[#allocation12 + $0x100] sm:$0xff]
    %v365 = vld [vmem:[#allocation12 + $0x108] sm:$0xff]
    %v366 = vld [vmem:[#allocation12 + $0x110] sm:$0xff]
    %v367 = vld [vmem:[#allocation12 + $0x118] sm:$0xff]
    %v368 = vld [vmem:[#allocation12 + $0x120] sm:$0xff]
    %v369 = vld [vmem:[#allocation12 + $0x128] sm:$0xff]
    %v370 = vld [vmem:[#allocation12 + $0x130] sm:$0xff]
    %v371 = vld [vmem:[#allocation12 + $0x138] sm:$0xff]
    %v372 = vld [vmem:[#allocation12 + $0x140] sm:$0xff]
    %v373 = vld [vmem:[#allocation12 + $0x148] sm:$0xff]
    %v374 = vld [vmem:[#allocation12 + $0x150] sm:$0xff]
    %v375 = vld [vmem:[#allocation12 + $0x158] sm:$0xff]
    %v376 = vld [vmem:[#allocation12 + $0x160] sm:$0xff]
    %v377 = vld [vmem:[#allocation12 + $0x168] sm:$0xff]
    %v378 = vld [vmem:[#allocation12 + $0x170] sm:$0xff]
    %v379 = vld [vmem:[#allocation12 + $0x178] sm:$0xff]
    %380 = vmatprep.subr.mxu0 %v333
    %381 = vmatpush1.msra.mxu0 %v332
    %382 = vmatprep.subr.mxu0 %v336
    %383 = vmatpush1.msra.mxu0 %v335
    %384 = vmatprep.subr.mxu0 %v339
    %385 = vmatpush1.msra.mxu0 %v338
    %386 = vmatprep.subr.mxu0 %v342
    %387 = vmatpush1.msra.mxu0 %v341
    %388 = vmatprep.subr.mxu0 %v345
    %389 = vmatpush1.msra.mxu0 %v344
    %390 = vmatprep.subr.mxu0 %v348
    %391 = vmatpush1.msra.mxu0 %v347
    %392 = vmatprep.subr.mxu0 %v351
    %393 = vmatpush1.msra.mxu0 %v350
    %394 = vmatprep.subr.mxu0 %v354
    %395 = vmatpush1.msra.mxu0 %v353
    %396 = vmatprep.subr.mxu0 %v357
    %397 = vmatpush1.msra.mxu0 %v356
    %398 = vmatprep.subr.mxu0 %v360
    %399 = vmatpush1.msra.mxu0 %v359
    %400 = vmatprep.subr.mxu0 %v363
    %401 = vmatpush1.msra.mxu0 %v362
    %402 = vmatprep.subr.mxu0 %v366
    %403 = vmatpush1.msra.mxu0 %v365
    %404 = vmatprep.subr.mxu0 %v369
    %405 = vmatpush1.msra.mxu0 %v368
    %406 = vmatprep.subr.mxu0 %v372
    %407 = vmatpush1.msra.mxu0 %v371
    %408 = vmatprep.subr.mxu0 %v375
    %409 = vmatpush1.msra.mxu0 %v374
    %410 = vmatprep.subr.mxu0 %v378
    %411 = vmatpush1.msra.mxu0 %v377
    %412 = vmatprep.subr.mxu0 0.0
    %413 = vmatpush1.msra.mxu0 0.0
    %414 = vmatprep.subr.mxu0 0.0
    %415 = vmatpush1.msra.mxu0 0.0
    %416 = vmatprep.subr.mxu0 0.0
    %417 = vmatpush1.msra.mxu0 0.0
    %418 = vmatprep.subr.mxu0 0.0
    %419 = vmatpush1.msra.mxu0 0.0
    %420 = vmatprep.subr.mxu0 0.0
    %421 = vmatpush1.msra.mxu0 0.0
    %422 = vmatprep.subr.mxu0 0.0
    %423 = vmatpush1.msra.mxu0 0.0
    %424 = vmatprep.subr.mxu0 0.0
    %425 = vmatpush1.msra.mxu0 0.0
    %426 = vmatprep.subr.mxu0 0.0
    %427 = vmatpush1.msra.mxu0 0.0
    %428 = vmatprep.subr.mxu0 0.0
    %429 = vmatpush1.msra.mxu0 0.0
    %430 = vmatprep.subr.mxu0 0.0
    %431 = vmatpush1.msra.mxu0 0.0
    %432 = vmatprep.subr.mxu0 0.0
    %433 = vmatpush1.msra.mxu0 0.0
    %434 = vmatprep.subr.mxu0 0.0
    %435 = vmatpush1.msra.mxu0 0.0
    %436 = vmatprep.subr.mxu0 0.0
    %437 = vmatpush1.msra.mxu0 0.0
    %438 = vmatprep.subr.mxu0 0.0
    %439 = vmatpush1.msra.mxu0 0.0
    %440 = vmatprep.subr.mxu0 0.0
    %441 = vmatpush1.msra.mxu0 0.0
    %442 = vmatprep.subr.mxu0 0.0
    %443 = vmatpush1.msra.mxu0 0.0
    %444 = vmatprep.mubr.f32.mxu0 0.0
    %445 = vmatmul.mubr.f32.gmra.mrb[0].mxu0 %v331
    %v446 = vpop.f32.mrb[0].mxu0
    %v447 = vadd.f32 0.0, %v446
    %v448 = vpop.f32.mrb[0].mxu0
    %v449 = vadd.f32 0.0, %v448
    %450 = vdwg.mxu0
    %451 = vmatprep.subr.mxu0 0.0
    %452 = vmatpush1.msra.mxu0 %v334
    %453 = vmatprep.subr.mxu0 0.0
    %454 = vmatpush1.msra.mxu0 %v337
    %455 = vmatprep.subr.mxu0 0.0
    %456 = vmatpush1.msra.mxu0 %v340
    %457 = vmatprep.subr.mxu0 0.0
    %458 = vmatpush1.msra.mxu0 %v343
    %459 = vmatprep.subr.mxu0 0.0
    %460 = vmatpush1.msra.mxu0 %v346
    %461 = vmatprep.subr.mxu0 0.0
    %462 = vmatpush1.msra.mxu0 %v349
    %463 = vmatprep.subr.mxu0 0.0
    %464 = vmatpush1.msra.mxu0 %v352
    %465 = vmatprep.subr.mxu0 0.0
    %466 = vmatpush1.msra.mxu0 %v355
    %467 = vmatprep.subr.mxu0 0.0
    %468 = vmatpush1.msra.mxu0 %v358
    %469 = vmatprep.subr.mxu0 0.0
    %470 = vmatpush1.msra.mxu0 %v361
    %471 = vmatprep.subr.mxu0 0.0
    %472 = vmatpush1.msra.mxu0 %v364
    %473 = vmatprep.subr.mxu0 0.0
    %474 = vmatpush1.msra.mxu0 %v367
    %475 = vmatprep.subr.mxu0 0.0
    %476 = vmatpush1.msra.mxu0 %v370
    %477 = vmatprep.subr.mxu0 0.0
    %478 = vmatpush1.msra.mxu0 %v373
    %479 = vmatprep.subr.mxu0 0.0
    %480 = vmatpush1.msra.mxu0 %v376
    %481 = vmatprep.subr.mxu0 0.0
    %482 = vmatpush1.msra.mxu0 %v379
    %483 = vmatprep.subr.mxu0 0.0
    %484 = vmatpush1.msra.mxu0 0.0
    %485 = vmatprep.subr.mxu0 0.0
    %486 = vmatpush1.msra.mxu0 0.0
    %487 = vmatprep.subr.mxu0 0.0
    %488 = vmatpush1.msra.mxu0 0.0
    %489 = vmatprep.subr.mxu0 0.0
    %490 = vmatpush1.msra.mxu0 0.0
    %491 = vmatprep.subr.mxu0 0.0
    %492 = vmatpush1.msra.mxu0 0.0
    %493 = vmatprep.subr.mxu0 0.0
    %494 = vmatpush1.msra.mxu0 0.0
    %495 = vmatprep.subr.mxu0 0.0
    %496 = vmatpush1.msra.mxu0 0.0
    %497 = vmatprep.subr.mxu0 0.0
    %498 = vmatpush1.msra.mxu0 0.0
    %499 = vmatprep.subr.mxu0 0.0
    %500 = vmatpush1.msra.mxu0 0.0
    %501 = vmatprep.subr.mxu0 0.0
    %502 = vmatpush1.msra.mxu0 0.0
    %503 = vmatprep.subr.mxu0 0.0
    %504 = vmatpush1.msra.mxu0 0.0
    %505 = vmatprep.subr.mxu0 0.0
    %506 = vmatpush1.msra.mxu0 0.0
    %507 = vmatprep.subr.mxu0 0.0
    %508 = vmatpush1.msra.mxu0 0.0
    %509 = vmatprep.subr.mxu0 0.0
    %510 = vmatpush1.msra.mxu0 0.0
    %511 = vmatprep.subr.mxu0 0.0
    %512 = vmatpush1.msra.mxu0 0.0
    %513 = vmatprep.subr.mxu0 0.0
    %514 = vmatpush1.msra.mxu0 0.0
    %515 = vmatprep.mubr.f32.mxu0 0.0
    %516 = vmatmul.mubr.f32.gmra.mrb[0].mxu0 %v331
    %v517 = vpop.f32.mrb[0].mxu0
    %v518 = vadd.f32 0.0, %v517
    %v519 = vpop.f32.mrb[0].mxu0
    %520 = vdwg.mxu0
    %v521 = vadd.f32 %v328, %v447
    %v522 = vadd.f32 %v329, %v449
    %v523 = vadd.f32 %v330, %v518
    %524 = vst [vmem:[#allocation3] sm:$0xff] %v521
    %525 = vst [vmem:[#allocation3 + $0x8] sm:$0xff] %v522
    %526 = vst [vmem:[#allocation3 + $0x10] sm:$0xff] %v523
    %v527 = vld [vmem:[#allocation2] sm:$0xff]
    %v528 = vld [vmem:[#allocation3] sm:$0xff]
    %v529 = vadd.f32 %v527, %v528
    %v530 = vxor.u32 %v529, 2147483648
    %v531 = vmul.f32 %v530, 1.442695
    %v532 = vpow.pop %v531
    %v533 = vadd.f32 %v532, 1.0
    %v534 = vrcp.pop %v533
    %v535 = vmul.f32 1.0, %v534
    %v536 = vld [vmem:[#allocation2 + $0x8] sm:$0xff]
    %v537 = vld [vmem:[#allocation3 + $0x8] sm:$0xff]
    %v538 = vadd.f32 %v536, %v537
    %v539 = vxor.u32 %v538, 2147483648
    %v540 = vmul.f32 %v539, 1.442695
    %v541 = vpow.pop %v540
    %v542 = vadd.f32 %v541, 1.0
    %v543 = vrcp.pop %v542
    %v544 = vmul.f32 1.0, %v543
    %v545 = vld [vmem:[#allocation3 + $0x10] sm:$0xff]
    %v546 = vmul.f32 %v535, %v545
    %v547 = vld [vmem:[#allocation2 + $0x10] sm:$0xff]
    %v548 = vadd.f32 %v546, %v547
    %v549 = vtanh.pop %v548
    %v550 = vld [vmem:[#allocation9] sm:$0xff]
    %v551 = vsub.f32 %v550, %v549
    %v552 = vmul.f32 %v544, %v551
    %v553 = vadd.f32 %v549, %v552
    %554 = vst [vmem:[#allocation13] sm:$0xff] %v553
    // Predicated region
    $region50: #{tpu_custom_call.1} parent=1 // pred_check
      _
    $region51: #{tpu_custom_call.1} parent=1 // pred_check_branch
      %556 = sbr.rel (0) target = $region53
    $region52: #{tpu_custom_call.1} parent=1 // pred_region
      %s558 = ssub.s32 128, 128
      %559 = vsyncadd [#allocation6], %s558
      %s561 = sshll.u32 [#allocation13], 4
      %s562 = int_to_ptr.vmem [resolvable:$true] %s561
      %564 = dma.vmem_to_hbm [thread:$0]  %s562, 128, %s7, [#allocation6]
    $region53: #{tpu_custom_call.1} parent=1 // pred_fallthru
      _
    // Predicated region
    $region54: #{tpu_custom_call.1} parent=1 // pred_check
      _
    $region55: #{tpu_custom_call.1} parent=1 // pred_check_branch
      %566 = sbr.rel (0) target = $region57
    $region56: #{tpu_custom_call.1} parent=1 // pred_region
      %567 = dma.done [#allocation6], 128
    $region57: #{tpu_custom_call.1} parent=1 // pred_fallthru
      _
    %568 = vsyncpa [#allocation5], 1
    %569 = vsyncpa [#allocation8], 1
    %570 = vsyncpa [#allocation11], 1
    %571 = vsyncpa [#allocation6], 1

</llo_original>
